<compile_context>
chip_gen: v6e
topology: v6e:2x2x1
jax: 0.10.0
libtpu: 0.0.40
codegen_flags: <defaults>
</compile_context>

<pallas_src>
import functools

import jax
import jax.numpy as jnp
from jax.experimental import pallas as pl
from jax.experimental.pallas import tpu as pltpu


def _round_up(x, m):
    return (x + m - 1) // m * m


def _cdiv(a, b):
    return -(-a // b)


def _qnet_kernel(xu_ref, w1_ref, b1_ref, w2_ref, b2_ref, wo_ref, bo_ref, out_ref):
    xu = xu_ref[...]                      # [TB, S+A]
    w1 = w1_ref[...]                      # [S+A, 2H]
    w2 = w2_ref[...]                      # [2H, 2H]  (block-diagonal)
    wo = wo_ref[...]                      # [2H, 2]   (block-diagonal head)

    # layer 1: relu(xu @ W1 + b1)   -- both branches in one matmul, f32 acc.
    h1 = jnp.dot(xu, w1, preferred_element_type=jnp.float32) + b1_ref[...]
    h1 = jnp.maximum(h1, 0.0)

    # layer 2: relu(h1 @ W2 + b2)   -- block-diagonal, still one matmul.
    h2 = jnp.dot(h1.astype(w2.dtype), w2,
                 preferred_element_type=jnp.float32) + b2_ref[...]
    h2 = jnp.maximum(h2, 0.0)

    # head: h2 @ Wo + bo -> packed [TB, 2]; col 0 = q1, col 1 = q2.
    q = jnp.dot(h2.astype(wo.dtype), wo,
                preferred_element_type=jnp.float32) + bo_ref[...]
    out_ref[...] = q.astype(out_ref.dtype)


@functools.partial(jax.jit, static_argnames=("tile_b", "compute_dtype"))
def qnet_forward(state, action, fused, *, tile_b=1024, compute_dtype=jnp.float32):
    """state: [B, S], action: [B, A]. fused: packed twin-branch params.

    Returns (q1, q2), each [B, 1] float32."""
    B, S = state.shape
    A = action.shape[1]
    itemsize = jnp.dtype(compute_dtype).itemsize

    # Fold the torch.cat([state, action], 1) into the wrapper (one DMA'd slab).
    xu = jnp.concatenate([state, action], axis=1).astype(compute_dtype)

    # --- adaptive batch tiling -------------------------------------------
    sub = 8 if itemsize == 4 else 16          # sublane tile (f32 / bf16)
    n_steps = max(1, _cdiv(B, tile_b))
    if B >= 256 and n_steps % 2 == 1 and n_steps > 1:
        n_steps += 1                          # keep grid even for v7x megacore
    if B >= 256 and n_steps == 1:
        n_steps = 2                           # give both v7x TCs >=1 step
    TB = _round_up(_cdiv(B, n_steps), sub)
    Bp = _round_up(B, TB)
    if Bp != B:
        xu = jnp.pad(xu, ((0, Bp - B), (0, 0)))
    grid = (Bp // TB,)

    # --- params: fused weights in compute dtype, biases kept f32 ---------
    w1 = fused["w1"].astype(compute_dtype)
    w2 = fused["w2"].astype(compute_dtype)
    wo = fused["wo"].astype(compute_dtype)
    b1 = fused["b1"].astype(jnp.float32)
    b2 = fused["b2"].astype(jnp.float32)
    bo = fused["bo"].astype(jnp.float32)
    H2 = w1.shape[1]                          # = 2 * hidden_dim

    # Weights/biases: full-array blocks with constant index_maps so they stay
    # VMEM-resident across all batch-grid steps.
    def resident(arr):
        nd = arr.ndim
        return pl.BlockSpec(arr.shape, lambda i, _nd=nd: (0,) * _nd)

    # Only raise the scoped VMEM limit if this config actually needs it
    # (large H on v7x); at small H the compiler default (32 MiB) is plenty.
    weight_bytes = 2 * itemsize * (w1.size + w2.size + wo.size)      # dbl-buffered
    bias_bytes = 2 * 4 * (b1.size + b2.size + bo.size)
    act_bytes = 2 * (TB * (S + A) * itemsize + TB * 2 * 4)           # in/out blocks
    tmp_bytes = 4 * TB * H2 * 4                                      # h1/h2 temps
    vmem_need = weight_bytes + bias_bytes + act_bytes + tmp_bytes
    vmem_limit = None
    if vmem_need > 32 * 1024 * 1024:
        vmem_limit = min(int(vmem_need * 1.25), 100 * 1024 * 1024)

    out = pl.pallas_call(
        _qnet_kernel,
        out_shape=jax.ShapeDtypeStruct((Bp, 2), jnp.float32),
        grid=grid,
        in_specs=[
            pl.BlockSpec((TB, S + A), lambda i: (i, 0)),
            resident(w1), resident(b1),
            resident(w2), resident(b2),
            resident(wo), resident(bo),
        ],
        out_specs=pl.BlockSpec((TB, 2), lambda i: (i, 0)),
        compiler_params=pltpu.CompilerParams(
            # Batch axis is embarrassingly parallel -> megacore sharding on v7x.
            dimension_semantics=("parallel",),
            vmem_limit_bytes=vmem_limit,
        ),
    )(xu, w1, b1, w2, b2, wo, bo)

    q = out[:B]
    return q[:, 0:1], q[:, 1:2]


# ----------------------------------------------------------------------------
# Parameter construction (matches PyTorch init: xavier_uniform weights, 0 bias)
# ----------------------------------------------------------------------------
def xavier_uniform(key, fan_in, fan_out):
    # matches torch.nn.init.xavier_uniform_ with gain=1 (symmetric in fans).
    limit = jnp.sqrt(6.0 / (fan_in + fan_out))
    return jax.random.uniform(key, (fan_in, fan_out), jnp.float32,
                              minval=-limit, maxval=limit)


def init_params(key, input_dim, action_dim, hidden_dim):
    """Per-branch params in [in_features, out_features] layout (x @ W + b)."""
    ks = jax.random.split(key, 6)
    din = input_dim + action_dim
    z = lambda n: jnp.zeros((1, n), jnp.float32)
    return {
        "w1_0": xavier_uniform(ks[0], din, hidden_dim), "b1_0": z(hidden_dim),
        "w2_0": xavier_uniform(ks[1], hidden_dim, hidden_dim), "b2_0": z(hidden_dim),
        "wo_0": xavier_uniform(ks[2], hidden_dim, 1), "bo_0": z(1),
        "w1_1": xavier_uniform(ks[3], din, hidden_dim), "b1_1": z(hidden_dim),
        "w2_1": xavier_uniform(ks[4], hidden_dim, hidden_dim), "b2_1": z(hidden_dim),
        "wo_1": xavier_uniform(ks[5], hidden_dim, 1), "bo_1": z(1),
    }


def fuse_params(p, hidden_dim):
    """Pack the twin branches into one weight set (exact: zero cross blocks)."""
    H = hidden_dim
    zhh = jnp.zeros((H, H), jnp.float32)
    zh1 = jnp.zeros((H, 1), jnp.float32)
    return {
        "w1": jnp.concatenate([p["w1_0"], p["w1_1"]], axis=1),      # [S+A, 2H]
        "b1": jnp.concatenate([p["b1_0"], p["b1_1"]], axis=1),      # [1, 2H]
        "w2": jnp.block([[p["w2_0"], zhh], [zhh, p["w2_1"]]]),      # [2H, 2H]
        "b2": jnp.concatenate([p["b2_0"], p["b2_1"]], axis=1),      # [1, 2H]
        "wo": jnp.block([[p["wo_0"], zh1], [zh1, p["wo_1"]]]),      # [2H, 2]
        "bo": jnp.concatenate([p["bo_0"], p["bo_1"]], axis=1),      # [1, 2]
    }


def _reference_forward(state, action, p):
    xu = jnp.concatenate([state, action], axis=1)

    def branch(w1, b1, w2, b2, wo, bo):
        h1 = jnp.maximum(xu @ w1 + b1, 0.0)
        h2 = jnp.maximum(h1 @ w2 + b2, 0.0)
        return h2 @ wo + bo

    q1 = branch(p["w1_0"], p["b1_0"], p["w2_0"], p["b2_0"], p["wo_0"], p["bo_0"])
    q2 = branch(p["w1_1"], p["b1_1"], p["w2_1"], p["b2_1"], p["wo_1"], p["bo_1"])
    return q1, q2


if __name__ == "__main__":
    key = jax.random.PRNGKey(0)
    k_params, k_state, k_action, k_state2, k_action2 = jax.random.split(key, 5)

    batch, input_dim, action_dim, hidden_dim = 8, 16, 8, 32
    params = init_params(k_params, input_dim, action_dim, hidden_dim)
    fused = fuse_params(params, hidden_dim)

    state = jax.random.normal(k_state, (batch, input_dim), dtype=jnp.float32)
    action = jax.random.normal(k_action, (batch, action_dim), dtype=jnp.float32)

    q1, q2 = qnet_forward(state, action, fused)
    jax.block_until_ready((q1, q2))

    ref_q1, ref_q2 = _reference_forward(state, action, params)
    assert q1.shape == (batch, 1) and q2.shape == (batch, 1)
    assert jnp.allclose(q1, ref_q1, atol=1e-5, rtol=1e-5)
    assert jnp.allclose(q2, ref_q2, atol=1e-5, rtol=1e-5)

    # Secondary check: awkward batch (exercises adaptive tiling + 2-step grid).
    B2 = 300
    state2 = jax.random.normal(k_state2, (B2, input_dim), dtype=jnp.float32)
    action2 = jax.random.normal(k_action2, (B2, action_dim), dtype=jnp.float32)
    p1, p2 = qnet_forward(state2, action2, fused)
    jax.block_until_ready((p1, p2))
    r1, r2 = _reference_forward(state2, action2, params)
    assert p1.shape == (B2, 1) and p2.shape == (B2, 1)
    assert jnp.allclose(p1, r1, atol=2e-4, rtol=2e-4)
    assert jnp.allclose(p2, r2, atol=2e-4, rtol=2e-4)

    print("KERNEL_OK")
</pallas_src>

<mosaic_0001>
module attributes {stable_mosaic.version = 11 : i64} {
  func.func @_qnet_kernel(%arg0: i32, %arg1: memref<8x24xf32, #tpu.memory_space<vmem>>, %arg2: memref<24x64xf32, #tpu.memory_space<vmem>>, %arg3: memref<1x64xf32, #tpu.memory_space<vmem>>, %arg4: memref<64x64xf32, #tpu.memory_space<vmem>>, %arg5: memref<1x64xf32, #tpu.memory_space<vmem>>, %arg6: memref<64x2xf32, #tpu.memory_space<vmem>>, %arg7: memref<1x2xf32, #tpu.memory_space<vmem>>, %arg8: memref<8x2xf32, #tpu.memory_space<vmem>>) attributes {dimension_semantics = [#tpu.dimension_semantics<parallel>], iteration_bounds = array<i64: 1>, scalar_prefetch = 0 : i64, scratch_operands = 0 : i64, tpu.core_type = #tpu.core_type<tc>, window_params = [{transform_indices = @transform_0, window_bounds = array<i64: 8, 24>}, {pipeline_mode = #tpu.pipeline_mode<synchronous>, transform_indices = @transform_1, window_bounds = array<i64: 24, 64>}, {pipeline_mode = #tpu.pipeline_mode<synchronous>, transform_indices = @transform_2, window_bounds = array<i64: 1, 64>}, {pipeline_mode = #tpu.pipeline_mode<synchronous>, transform_indices = @transform_3, window_bounds = array<i64: 64, 64>}, {pipeline_mode = #tpu.pipeline_mode<synchronous>, transform_indices = @transform_4, window_bounds = array<i64: 1, 64>}, {pipeline_mode = #tpu.pipeline_mode<synchronous>, transform_indices = @transform_5, window_bounds = array<i64: 64, 2>}, {pipeline_mode = #tpu.pipeline_mode<synchronous>, transform_indices = @transform_6, window_bounds = array<i64: 1, 2>}, {transform_indices = @transform_7, window_bounds = array<i64: 8, 2>}]} {
    %c0 = arith.constant 0 : index
    %c0_0 = arith.constant 0 : index
    %0 = vector.load %arg1[%c0, %c0_0] : memref<8x24xf32, #tpu.memory_space<vmem>>, vector<8x24xf32>
    %c0_1 = arith.constant 0 : index
    %c0_2 = arith.constant 0 : index
    %1 = vector.load %arg2[%c0_1, %c0_2] : memref<24x64xf32, #tpu.memory_space<vmem>>, vector<24x64xf32>
    %c0_3 = arith.constant 0 : index
    %c0_4 = arith.constant 0 : index
    %2 = vector.load %arg4[%c0_3, %c0_4] : memref<64x64xf32, #tpu.memory_space<vmem>>, vector<64x64xf32>
    %c0_5 = arith.constant 0 : index
    %c0_6 = arith.constant 0 : index
    %3 = vector.load %arg6[%c0_5, %c0_6] : memref<64x2xf32, #tpu.memory_space<vmem>>, vector<64x2xf32>
    %cst = arith.constant dense<0.000000e+00> : vector<8x64xf32>
    %4 = tpu.matmul %0, %1, %cst {dimension_numbers = #tpu.dot_dimension_numbers<[1], [0], [0], [1], [0, 0, 1, 1], [], []>} : vector<8x24xf32>, vector<24x64xf32>, vector<8x64xf32> -> vector<8x64xf32>
    %c0_7 = arith.constant 0 : index
    %c0_8 = arith.constant 0 : index
    %5 = vector.load %arg3[%c0_7, %c0_8] : memref<1x64xf32, #tpu.memory_space<vmem>>, vector<1x64xf32>
    %6 = vector.broadcast %5 : vector<1x64xf32> to vector<8x64xf32>
    %7 = arith.addf %4, %6 : vector<8x64xf32>
    %cst_9 = arith.constant 0.000000e+00 : f32
    %8 = vector.broadcast %cst_9 : f32 to vector<8x64xf32>
    %9 = arith.maximumf %7, %8 : vector<8x64xf32>
    %cst_10 = arith.constant dense<0.000000e+00> : vector<8x64xf32>
    %10 = tpu.matmul %9, %2, %cst_10 {dimension_numbers = #tpu.dot_dimension_numbers<[1], [0], [0], [1], [0, 0, 1, 1], [], []>} : vector<8x64xf32>, vector<64x64xf32>, vector<8x64xf32> -> vector<8x64xf32>
    %c0_11 = arith.constant 0 : index
    %c0_12 = arith.constant 0 : index
    %11 = vector.load %arg5[%c0_11, %c0_12] : memref<1x64xf32, #tpu.memory_space<vmem>>, vector<1x64xf32>
    %12 = vector.broadcast %11 : vector<1x64xf32> to vector<8x64xf32>
    %13 = arith.addf %10, %12 : vector<8x64xf32>
    %cst_13 = arith.constant 0.000000e+00 : f32
    %14 = vector.broadcast %cst_13 : f32 to vector<8x64xf32>
    %15 = arith.maximumf %13, %14 : vector<8x64xf32>
    %cst_14 = arith.constant dense<0.000000e+00> : vector<8x2xf32>
    %16 = tpu.matmul %15, %3, %cst_14 {dimension_numbers = #tpu.dot_dimension_numbers<[1], [0], [0], [1], [0, 0, 1, 1], [], []>} : vector<8x64xf32>, vector<64x2xf32>, vector<8x2xf32> -> vector<8x2xf32>
    %c0_15 = arith.constant 0 : index
    %c0_16 = arith.constant 0 : index
    %17 = vector.load %arg7[%c0_15, %c0_16] : memref<1x2xf32, #tpu.memory_space<vmem>>, vector<1x2xf32>
    %18 = vector.broadcast %17 : vector<1x2xf32> to vector<8x2xf32>
    %19 = arith.addf %16, %18 : vector<8x2xf32>
    %c0_17 = arith.constant 0 : index
    %c0_18 = arith.constant 0 : index
    %20 = vector.load %arg8[%c0_17, %c0_18] : memref<8x2xf32, #tpu.memory_space<vmem>>, vector<8x2xf32>
    tpu.vector_store %arg8[%c0_17, %c0_18], %19 {strides = array<i32>} : memref<8x2xf32, #tpu.memory_space<vmem>>, vector<8x2xf32>,
    return
  }
  func.func @transform_0(%arg0: i32) -> (i32, i32) {
    %c0_i32 = arith.constant 0 : i32
    %c0_i32_0 = arith.constant 0 : i32
    return %arg0, %c0_i32 : i32, i32
  }
  func.func @transform_1(%arg0: i32) -> (i32, i32) {
    %c0_i32 = arith.constant 0 : i32
    %c0_i32_0 = arith.constant 0 : i32
    %c0_i32_1 = arith.constant 0 : i32
    return %c0_i32, %c0_i32_0 : i32, i32
  }
  func.func @transform_2(%arg0: i32) -> (i32, i32) {
    %c0_i32 = arith.constant 0 : i32
    %c0_i32_0 = arith.constant 0 : i32
    %c0_i32_1 = arith.constant 0 : i32
    return %c0_i32, %c0_i32_0 : i32, i32
  }
  func.func @transform_3(%arg0: i32) -> (i32, i32) {
    %c0_i32 = arith.constant 0 : i32
    %c0_i32_0 = arith.constant 0 : i32
    %c0_i32_1 = arith.constant 0 : i32
    return %c0_i32, %c0_i32_0 : i32, i32
  }
  func.func @transform_4(%arg0: i32) -> (i32, i32) {
    %c0_i32 = arith.constant 0 : i32
    %c0_i32_0 = arith.constant 0 : i32
    %c0_i32_1 = arith.constant 0 : i32
    return %c0_i32, %c0_i32_0 : i32, i32
  }
  func.func @transform_5(%arg0: i32) -> (i32, i32) {
    %c0_i32 = arith.constant 0 : i32
    %c0_i32_0 = arith.constant 0 : i32
    %c0_i32_1 = arith.constant 0 : i32
    return %c0_i32, %c0_i32_0 : i32, i32
  }
  func.func @transform_6(%arg0: i32) -> (i32, i32) {
    %c0_i32 = arith.constant 0 : i32
    %c0_i32_0 = arith.constant 0 : i32
    %c0_i32_1 = arith.constant 0 : i32
    return %c0_i32, %c0_i32_0 : i32, i32
  }
  func.func @transform_7(%arg0: i32) -> (i32, i32) {
    %c0_i32 = arith.constant 0 : i32
    %c0_i32_0 = arith.constant 0 : i32
    return %arg0, %c0_i32 : i32, i32
  }
}

</mosaic_0001>

<llo_original>
// kernel: qnet_forward.1
$region0: #{qnet_forward.1}
  #allocation0 [shape = 'u32[]', space=smem, size = 0x4, offset = 0x4, fixed_abs, tag = 'smem constant byte address 0x4 - core index']
  #allocation1 [shape = 'u32[144,128]{1,0:T(1,128)}', space=vmem, size = 0x12000, scoped, tag = 'internal scratch']
  %s0 = inlined_call_operand.vmem [shape: f32[8,24], index: 0, kind: input, shape index: {}]
  %s1 = inlined_call_operand.vmem [shape: f32[24,64], index: 1, kind: input, shape index: {}]
  %s2 = inlined_call_operand.vmem [shape: f32[1,64], index: 2, kind: input, shape index: {}]
  %s3 = inlined_call_operand.vmem [shape: f32[64,64], index: 3, kind: input, shape index: {}]
  %s4 = inlined_call_operand.vmem [shape: f32[1,64], index: 4, kind: input, shape index: {}]
  %s5 = inlined_call_operand.vmem [shape: f32[64,2], index: 5, kind: input, shape index: {}]
  %s6 = inlined_call_operand.vmem [shape: f32[1,2], index: 6, kind: input, shape index: {}]
  %s7 = inlined_call_operand.vmem [shape: f32[8,2], index: 7, kind: output, shape index: {}]
  %s8 = sld [smem:[#allocation0]]
  $region38: #{qnet_forward.1} parent=0
    _
  %s10 = ssub.s32 1, %s8
  %s11 = scalar_select 0, %s10, %s8
  // Predicated region
  $region2: #{qnet_forward.1} parent=0 // pred_check
    _
  $region3: #{qnet_forward.1} parent=0 // pred_check_branch
    %13 = sbr.rel (0) target = $region5
  $region4: #{qnet_forward.1} parent=0 // pred_region
    _
  $region5: #{qnet_forward.1} parent=0 // pred_fallthru
    _
  // Predicated region
  $region6: #{qnet_forward.1} parent=0 // pred_check
    _
  $region7: #{qnet_forward.1} parent=0 // pred_check_branch
    %15 = sbr.rel (0) target = $region9
  $region8: #{qnet_forward.1} parent=0 // pred_region
    _
  $region9: #{qnet_forward.1} parent=0 // pred_fallthru
    _
  // Predicated region
  $region10: #{qnet_forward.1} parent=0 // pred_check
    _
  $region11: #{qnet_forward.1} parent=0 // pred_check_branch
    %17 = sbr.rel (0) target = $region13
  $region12: #{qnet_forward.1} parent=0 // pred_region
    _
  $region13: #{qnet_forward.1} parent=0 // pred_fallthru
    _
  // Predicated region
  $region14: #{qnet_forward.1} parent=0 // pred_check
    _
  $region15: #{qnet_forward.1} parent=0 // pred_check_branch
    %19 = sbr.rel (0) target = $region17
  $region16: #{qnet_forward.1} parent=0 // pred_region
    _
  $region17: #{qnet_forward.1} parent=0 // pred_fallthru
    _
  // Predicated region
  $region18: #{qnet_forward.1} parent=0 // pred_check
    _
  $region19: #{qnet_forward.1} parent=0 // pred_check_branch
    %21 = sbr.rel (0) target = $region21
  $region20: #{qnet_forward.1} parent=0 // pred_region
    _
  $region21: #{qnet_forward.1} parent=0 // pred_fallthru
    _
  // Predicated region
  $region22: #{qnet_forward.1} parent=0 // pred_check
    _
  $region23: #{qnet_forward.1} parent=0 // pred_check_branch
    %23 = sbr.rel (0) target = $region25
  $region24: #{qnet_forward.1} parent=0 // pred_region
    _
  $region25: #{qnet_forward.1} parent=0 // pred_fallthru
    _
  // Predicated region
  $region26: #{qnet_forward.1} parent=0 // pred_check
    _
  $region27: #{qnet_forward.1} parent=0 // pred_check_branch
    %25 = sbr.rel (0) target = $region29
  $region28: #{qnet_forward.1} parent=0 // pred_region
    _
  $region29: #{qnet_forward.1} parent=0 // pred_fallthru
    _
  %v26 = vld [vmem:[%s0] sm:$0xff]
  %v27 = vld [vmem:[%s1] sm:$0xff]
  %v28 = vld [vmem:[%s1 + $0x8] sm:$0xff]
  %v29 = vld [vmem:[%s1 + $0x10] sm:$0xff]
  %v30 = vld [vmem:[%s3] sm:$0xff]
  %v31 = vld [vmem:[%s3 + $0x8] sm:$0xff]
  %v32 = vld [vmem:[%s3 + $0x10] sm:$0xff]
  %v33 = vld [vmem:[%s3 + $0x18] sm:$0xff]
  %v34 = vld [vmem:[%s3 + $0x20] sm:$0xff]
  %v35 = vld [vmem:[%s3 + $0x28] sm:$0xff]
  %v36 = vld [vmem:[%s3 + $0x30] sm:$0xff]
  %v37 = vld [vmem:[%s3 + $0x38] sm:$0xff]
  %v38 = vld [vmem:[%s5] sm:$0xff]
  %v39 = vld [vmem:[%s5 + $0x8] sm:$0xff]
  %v40 = vld [vmem:[%s5 + $0x10] sm:$0xff]
  %v41 = vld [vmem:[%s5 + $0x18] sm:$0xff]
  %v42 = vld [vmem:[%s5 + $0x20] sm:$0xff]
  %v43 = vld [vmem:[%s5 + $0x28] sm:$0xff]
  %v44 = vld [vmem:[%s5 + $0x30] sm:$0xff]
  %v45 = vld [vmem:[%s5 + $0x38] sm:$0xff]
  %v46 = vld [vmem:[%s2] sm:$0x1]
  %v48 = vlaneseq
  %v49 = vshrl.u32 %v48, 7
  %v50 = vsub.s32 0, %v49
  %v51 = vrot.slane %v46, %v50
  %vm53 = vcmask 195584
  %v55 = vsel %vm53, %v26, 0
  %57 = vmatprep.subr.mxu0 0.0
  %58 = vmatpush1.msra.mxu0 0.0
  %59 = vmatprep.subr.mxu0 0.0
  %60 = vmatpush1.msra.mxu0 0.0
  %61 = vmatprep.subr.mxu0 0.0
  %62 = vmatpush1.msra.mxu0 0.0
  %63 = vmatprep.subr.mxu0 0.0
  %64 = vmatpush1.msra.mxu0 0.0
  %65 = vmatprep.subr.mxu0 0.0
  %66 = vmatpush1.msra.mxu0 0.0
  %67 = vmatprep.subr.mxu0 0.0
  %68 = vmatpush1.msra.mxu0 0.0
  %69 = vmatprep.subr.mxu0 0.0
  %70 = vmatpush1.msra.mxu0 0.0
  %71 = vmatprep.subr.mxu0 0.0
  %72 = vmatpush1.msra.mxu0 0.0
  %73 = vmatprep.subr.mxu0 0.0
  %74 = vmatpush1.msra.mxu0 0.0
  %75 = vmatprep.subr.mxu0 0.0
  %76 = vmatpush1.msra.mxu0 0.0
  %77 = vmatprep.subr.mxu0 0.0
  %78 = vmatpush1.msra.mxu0 0.0
  %79 = vmatprep.subr.mxu0 0.0
  %80 = vmatpush1.msra.mxu0 0.0
  %81 = vmatprep.subr.mxu0 0.0
  %82 = vmatpush1.msra.mxu0 0.0
  %83 = vmatprep.subr.mxu0 0.0
  %84 = vmatpush1.msra.mxu0 %v29
  %85 = vmatprep.subr.mxu0 0.0
  %86 = vmatpush1.msra.mxu0 %v28
  %87 = vmatprep.subr.mxu0 0.0
  %88 = vmatpush1.msra.mxu0 %v27
  %89 = vmatprep.subr.mxu0 0.0
  %90 = vmatpush2.msra.mxu0 0.0
  %91 = vmatprep.subr.mxu0 0.0
  %92 = vmatpush2.msra.mxu0 0.0
  %93 = vmatprep.subr.mxu0 0.0
  %94 = vmatpush2.msra.mxu0 0.0
  %95 = vmatprep.subr.mxu0 0.0
  %96 = vmatpush2.msra.mxu0 0.0
  %97 = vmatprep.subr.mxu0 0.0
  %98 = vmatpush2.msra.mxu0 0.0
  %99 = vmatprep.subr.mxu0 0.0
  %100 = vmatpush2.msra.mxu0 0.0
  %101 = vmatprep.subr.mxu0 0.0
  %102 = vmatpush2.msra.mxu0 0.0
  %103 = vmatprep.subr.mxu0 0.0
  %104 = vmatpush2.msra.mxu0 0.0
  %105 = vmatprep.subr.mxu0 0.0
  %106 = vmatpush2.msra.mxu0 0.0
  %107 = vmatprep.subr.mxu0 0.0
  %108 = vmatpush2.msra.mxu0 0.0
  %109 = vmatprep.subr.mxu0 0.0
  %110 = vmatpush2.msra.mxu0 0.0
  %111 = vmatprep.subr.mxu0 0.0
  %112 = vmatpush2.msra.mxu0 0.0
  %113 = vmatprep.subr.mxu0 0.0
  %114 = vmatpush2.msra.mxu0 0.0
  %115 = vmatprep.subr.mxu0 0.0
  %116 = vmatpush2.msra.mxu0 0.0
  %117 = vmatprep.subr.mxu0 0.0
  %118 = vmatpush2.msra.mxu0 0.0
  %119 = vmatprep.subr.mxu0 0.0
  %120 = vmatpush2.msra.mxu0 0.0
  %121 = vmatprep.mubr.f32.mxu0 0.0
  %122 = vmatmul.mubr.f32.gmra.mxu0 %v55
  %v123 = vpop.f32.mrf.mxu0
  %v124 = vadd.f32 %v51, %v123
  %v125 = vpop.f32.mrf.mxu0
  %126 = vdwg.mxu0
  %v127 = vmax.f32 %v124, 0.0
  %v128 = vld [vmem:[%s4] sm:$0x1]
  %v130 = vlaneseq
  %v131 = vshrl.u32 %v130, 7
  %v132 = vsub.s32 0, %v131
  %v133 = vrot.slane %v128, %v132
  %vm135 = vcmask 523264
  %v137 = vsel %vm135, %v127, 0
  %139 = vmatprep.subr.mxu0 0.0
  %140 = vmatpush1.msra.mxu0 0.0
  %141 = vmatprep.subr.mxu0 0.0
  %142 = vmatpush1.msra.mxu0 0.0
  %143 = vmatprep.subr.mxu0 0.0
  %144 = vmatpush1.msra.mxu0 0.0
  %145 = vmatprep.subr.mxu0 0.0
  %146 = vmatpush1.msra.mxu0 0.0
  %147 = vmatprep.subr.mxu0 0.0
  %148 = vmatpush1.msra.mxu0 0.0
  %149 = vmatprep.subr.mxu0 0.0
  %150 = vmatpush1.msra.mxu0 0.0
  %151 = vmatprep.subr.mxu0 0.0
  %152 = vmatpush1.msra.mxu0 0.0
  %153 = vmatprep.subr.mxu0 0.0
  %154 = vmatpush1.msra.mxu0 0.0
  %155 = vmatprep.subr.mxu0 0.0
  %156 = vmatpush1.msra.mxu0 %v37
  %157 = vmatprep.subr.mxu0 0.0
  %158 = vmatpush1.msra.mxu0 %v36
  %159 = vmatprep.subr.mxu0 0.0
  %160 = vmatpush1.msra.mxu0 %v35
  %161 = vmatprep.subr.mxu0 0.0
  %162 = vmatpush1.msra.mxu0 %v34
  %163 = vmatprep.subr.mxu0 0.0
  %164 = vmatpush1.msra.mxu0 %v33
  %165 = vmatprep.subr.mxu0 0.0
  %166 = vmatpush1.msra.mxu0 %v32
  %167 = vmatprep.subr.mxu0 0.0
  %168 = vmatpush1.msra.mxu0 %v31
  %169 = vmatprep.subr.mxu0 0.0
  %170 = vmatpush1.msra.mxu0 %v30
  %171 = vmatprep.subr.mxu0 0.0
  %172 = vmatpush2.msra.mxu0 0.0
  %173 = vmatprep.subr.mxu0 0.0
  %174 = vmatpush2.msra.mxu0 0.0
  %175 = vmatprep.subr.mxu0 0.0
  %176 = vmatpush2.msra.mxu0 0.0
  %177 = vmatprep.subr.mxu0 0.0
  %178 = vmatpush2.msra.mxu0 0.0
  %179 = vmatprep.subr.mxu0 0.0
  %180 = vmatpush2.msra.mxu0 0.0
  %181 = vmatprep.subr.mxu0 0.0
  %182 = vmatpush2.msra.mxu0 0.0
  %183 = vmatprep.subr.mxu0 0.0
  %184 = vmatpush2.msra.mxu0 0.0
  %185 = vmatprep.subr.mxu0 0.0
  %186 = vmatpush2.msra.mxu0 0.0
  %187 = vmatprep.subr.mxu0 0.0
  %188 = vmatpush2.msra.mxu0 0.0
  %189 = vmatprep.subr.mxu0 0.0
  %190 = vmatpush2.msra.mxu0 0.0
  %191 = vmatprep.subr.mxu0 0.0
  %192 = vmatpush2.msra.mxu0 0.0
  %193 = vmatprep.subr.mxu0 0.0
  %194 = vmatpush2.msra.mxu0 0.0
  %195 = vmatprep.subr.mxu0 0.0
  %196 = vmatpush2.msra.mxu0 0.0
  %197 = vmatprep.subr.mxu0 0.0
  %198 = vmatpush2.msra.mxu0 0.0
  %199 = vmatprep.subr.mxu0 0.0
  %200 = vmatpush2.msra.mxu0 0.0
  %201 = vmatprep.subr.mxu0 0.0
  %202 = vmatpush2.msra.mxu0 0.0
  %203 = vmatprep.mubr.f32.mxu0 0.0
  %204 = vmatmul.mubr.f32.gmra.mxu0 %v137
  %v205 = vpop.f32.mrf.mxu0
  %v206 = vadd.f32 %v133, %v205
  %v207 = vpop.f32.mrf.mxu0
  %208 = vdwg.mxu0
  %v209 = vmax.f32 %v206, 0.0
  %v210 = vld [vmem:[%s6] sm:$0x1]
  %v212 = vlaneseq
  %v213 = vshrl.u32 %v212, 7
  %v214 = vsub.s32 0, %v213
  %v215 = vrot.slane %v210, %v214
  %v218 = vsel %vm135, %v209, 0
  %220 = vmatprep.subr.mxu0 0.0
  %221 = vmatpush1.msra.mxu0 0.0
  %222 = vmatprep.subr.mxu0 0.0
  %223 = vmatpush1.msra.mxu0 0.0
  %224 = vmatprep.subr.mxu0 0.0
  %225 = vmatpush1.msra.mxu0 0.0
  %226 = vmatprep.subr.mxu0 0.0
  %227 = vmatpush1.msra.mxu0 0.0
  %228 = vmatprep.subr.mxu0 0.0
  %229 = vmatpush1.msra.mxu0 0.0
  %230 = vmatprep.subr.mxu0 0.0
  %231 = vmatpush1.msra.mxu0 0.0
  %232 = vmatprep.subr.mxu0 0.0
  %233 = vmatpush1.msra.mxu0 0.0
  %234 = vmatprep.subr.mxu0 0.0
  %235 = vmatpush1.msra.mxu0 0.0
  %236 = vmatprep.subr.mxu0 0.0
  %237 = vmatpush1.msra.mxu0 %v45
  %238 = vmatprep.subr.mxu0 0.0
  %239 = vmatpush1.msra.mxu0 %v44
  %240 = vmatprep.subr.mxu0 0.0
  %241 = vmatpush1.msra.mxu0 %v43
  %242 = vmatprep.subr.mxu0 0.0
  %243 = vmatpush1.msra.mxu0 %v42
  %244 = vmatprep.subr.mxu0 0.0
  %245 = vmatpush1.msra.mxu0 %v41
  %246 = vmatprep.subr.mxu0 0.0
  %247 = vmatpush1.msra.mxu0 %v40
  %248 = vmatprep.subr.mxu0 0.0
  %249 = vmatpush1.msra.mxu0 %v39
  %250 = vmatprep.subr.mxu0 0.0
  %251 = vmatpush1.msra.mxu0 %v38
  %252 = vmatprep.subr.mxu0 0.0
  %253 = vmatpush2.msra.mxu0 0.0
  %254 = vmatprep.subr.mxu0 0.0
  %255 = vmatpush2.msra.mxu0 0.0
  %256 = vmatprep.subr.mxu0 0.0
  %257 = vmatpush2.msra.mxu0 0.0
  %258 = vmatprep.subr.mxu0 0.0
  %259 = vmatpush2.msra.mxu0 0.0
  %260 = vmatprep.subr.mxu0 0.0
  %261 = vmatpush2.msra.mxu0 0.0
  %262 = vmatprep.subr.mxu0 0.0
  %263 = vmatpush2.msra.mxu0 0.0
  %264 = vmatprep.subr.mxu0 0.0
  %265 = vmatpush2.msra.mxu0 0.0
  %266 = vmatprep.subr.mxu0 0.0
  %267 = vmatpush2.msra.mxu0 0.0
  %268 = vmatprep.subr.mxu0 0.0
  %269 = vmatpush2.msra.mxu0 0.0
  %270 = vmatprep.subr.mxu0 0.0
  %271 = vmatpush2.msra.mxu0 0.0
  %272 = vmatprep.subr.mxu0 0.0
  %273 = vmatpush2.msra.mxu0 0.0
  %274 = vmatprep.subr.mxu0 0.0
  %275 = vmatpush2.msra.mxu0 0.0
  %276 = vmatprep.subr.mxu0 0.0
  %277 = vmatpush2.msra.mxu0 0.0
  %278 = vmatprep.subr.mxu0 0.0
  %279 = vmatpush2.msra.mxu0 0.0
  %280 = vmatprep.subr.mxu0 0.0
  %281 = vmatpush2.msra.mxu0 0.0
  %282 = vmatprep.subr.mxu0 0.0
  %283 = vmatpush2.msra.mxu0 0.0
  %284 = vmatprep.mubr.f32.mxu0 0.0
  %285 = vmatmul.mubr.f32.gmra.mxu0 %v218
  %v286 = vpop.f32.mrf.mxu0
  %v287 = vadd.f32 %v215, %v286
  %v288 = vpop.f32.mrf.mxu0
  %289 = vdwg.mxu0
  %vm290 = vcmask 15360
  %291 = vst.msk [vmem:[%s7] sm:$0xff] %vm290, %v287
  // Predicated region
  $region30: #{qnet_forward.1} parent=0 // pred_check
    _
  $region31: #{qnet_forward.1} parent=0 // pred_check_branch
    %293 = sbr.rel (0) target = $region33
  $region32: #{qnet_forward.1} parent=0 // pred_region
    _
  $region33: #{qnet_forward.1} parent=0 // pred_fallthru
    _
  // Predicated region
  $region34: #{qnet_forward.1} parent=0 // pred_check
    _
  $region35: #{qnet_forward.1} parent=0 // pred_check_branch
    %295 = sbr.rel (0) target = $region37
  $region36: #{qnet_forward.1} parent=0 // pred_region
    _
  $region37: #{qnet_forward.1} parent=0 // pred_fallthru
    _

</llo_original>
